<compile_context>
chip_gen: v6e
topology: v6e:2x2x1
jax: 0.10.0
libtpu: 0.0.40
codegen_flags: <defaults>
</compile_context>

<pallas_src>
import jax
import jax.numpy as jnp
from jax import lax
from jax.experimental import pallas as pl
from jax.experimental.pallas import tpu as pltpu


# ----------------------- config parsing (pure python glue) -----------------------
ARCH = [[1], [1, 0], [1, 1, 1]]
NN_CONFIG = {
    "input_sizes": [5],
    "output_sizes": [7],
    "embedding": {"1": {"opt_type": "dense", "opt_params": {"units": "10"}}},
}


def parse_config(arch, nn_config):
    embedding = nn_config["embedding"]
    input_size = nn_config["input_sizes"][0]
    output_size = nn_config["output_sizes"][0]
    unit_list = []
    act_list = [input_size]
    in_val = input_size
    carry = 0
    skip_cons = {0: []}
    for idx, l in enumerate(arch):
        layer_type = embedding[str(l[0])]
        if layer_type["opt_type"] != "dense":
            raise ValueError("found non-dense layer")
        out_val = int(layer_type["opt_params"]["units"])
        act_list.append(out_val)
        unit_list.append((in_val + carry, out_val))
        in_val = out_val
        carry = 0
        skip_cons[idx + 1] = []
        for skip_id in range(1, len(l)):
            if l[skip_id] == 1:
                carry += act_list[skip_id - 1]
                skip_cons[idx + 1].append(skip_id - 1)
    unit_list.append((in_val + carry, output_size))
    return unit_list, skip_cons


UNIT_LIST, SKIP_CONS = parse_config(ARCH, NN_CONFIG)
# UNIT_LIST == [(5, 10), (10, 10), (10, 10), (25, 7)]
# SKIP_CONS == {0: [], 1: [], 2: [], 3: [0, 1]}

IN_DIM = NN_CONFIG["input_sizes"][0]    # 5
HID = 10
OUT_DIM = NN_CONFIG["output_sizes"][0]  # 7

# Zero-padded feature dims (padded weight rows/cols and bias rows are zero, so the
# padding only ever produces zeros and the math stays exact).
IN_PAD = 8     # x features -> 8 sublanes
H_PAD = 16     # hidden rows -> 16 sublanes
OUT_PAD = 8    # output rows -> 8 sublanes (row 7 is a zero pad row)

CHUNK_DEFAULT = 512          # lanes per in-kernel chunk (multiple of 128)
MAX_CHUNKS_PER_STEP = 128    # 128 * 512 = 65536 lanes / grid step (~2 MiB f32 x-block)


# --------------------------------- Pallas kernel ---------------------------------
def net_kernel(w0_ref, wh_ref, bh_ref, w3x_ref, w3h_ref, b3_ref, x_ref, o_ref):
    """Lane-dense forward over one batch tile of `ncp` chunks.

    w0_ref  : (H_PAD, IN_PAD)      W0 (torch (out,in) layout)
    wh_ref  : (2, H_PAD, H_PAD)    [W1, W2]
    bh_ref  : (3, H_PAD, 1)        [b0, b1, b2]          (always f32)
    w3x_ref : (OUT_PAD, IN_PAD)    W3[:, 0:5]   (x part of the concat)
    w3h_ref : (2, OUT_PAD, H_PAD)  [W3[:, 5:15], W3[:, 15:25]]  (h1 / h3 parts)
    b3_ref  : (OUT_PAD, 1)         b3                    (always f32)
    x_ref   : (ncp, IN_PAD, CH)    x^T chunks (batch on the lane axis)
    o_ref   : (ncp, OUT_PAD, CH)   y^T chunks
    """
    # Tiny resident parameters: load once per tile, live in vregs across the loop.
    w0 = w0_ref[...]
    w1, w2 = wh_ref[0], wh_ref[1]
    b0, b1, b2 = bh_ref[0], bh_ref[1], bh_ref[2]
    w3x = w3x_ref[...]
    w3h1, w3h3 = w3h_ref[0], w3h_ref[1]
    b3 = b3_ref[...]
    cdt = w0.dtype  # MXU feed dtype (f32 or bf16); accumulation / bias / ReLU in f32

    def chunk_body(j, carry):
        xc = x_ref[j]                                                    # (IN_PAD, CH)
        h1 = jnp.maximum(
            jnp.dot(w0, xc, preferred_element_type=jnp.float32) + b0, 0.0).astype(cdt)
        h2 = jnp.maximum(
            jnp.dot(w1, h1, preferred_element_type=jnp.float32) + b1, 0.0).astype(cdt)
        h3 = jnp.maximum(
            jnp.dot(w2, h2, preferred_element_type=jnp.float32) + b2, 0.0).astype(cdt)
        # Final layer == L3(cat([x, h1, h3], dim=1)) as a split matmul; no activation.
        out = (jnp.dot(w3x, xc, preferred_element_type=jnp.float32)
               + jnp.dot(w3h1, h1, preferred_element_type=jnp.float32)
               + jnp.dot(w3h3, h3, preferred_element_type=jnp.float32)
               + b3)                                                     # (OUT_PAD, CH)
        o_ref[j] = out.astype(o_ref.dtype)
        return carry

    lax.fori_loop(0, x_ref.shape[0], chunk_body, 0)


# ----------------------------- parameter slab packing -----------------------------
def _pad2(w, rows, cols, dtype):
    return jnp.zeros((rows, cols), dtype).at[: w.shape[0], : w.shape[1]].set(
        w.astype(dtype))


def _build_param_slabs(params, compute_dtype):
    """Collapse the 8 torch-style (out,in) parameters into 6 zero-padded slabs."""
    w0, b0, w1, b1, w2, b2, w3, b3 = params
    # torch concat order: [buffer[0]=x, buffer[1]=h1, out=h3] -> cols 0:5 / 5:15 / 15:25.
    w3x = w3[:, :IN_DIM]
    w3h1 = w3[:, IN_DIM:IN_DIM + HID]
    w3h3 = w3[:, IN_DIM + HID:]

    w0p = _pad2(w0, H_PAD, IN_PAD, compute_dtype)                         # (16, 8)
    whp = jnp.stack([_pad2(w1, H_PAD, H_PAD, compute_dtype),
                     _pad2(w2, H_PAD, H_PAD, compute_dtype)])             # (2, 16, 16)
    bhp = jnp.stack([_pad2(b.reshape(-1, 1), H_PAD, 1, jnp.float32)
                     for b in (b0, b1, b2)])                              # (3, 16, 1)
    w3xp = _pad2(w3x, OUT_PAD, IN_PAD, compute_dtype)                     # (8, 8)
    w3hp = jnp.stack([_pad2(w3h1, OUT_PAD, H_PAD, compute_dtype),
                      _pad2(w3h3, OUT_PAD, H_PAD, compute_dtype)])        # (2, 8, 16)
    b3p = _pad2(b3.reshape(-1, 1), OUT_PAD, 1, jnp.float32)               # (8, 1)
    return w0p, whp, bhp, w3xp, w3hp, b3p


# -------------------------- lane-dense pallas entry point -------------------------
def net_forward_lanes(x3, params, *, chunks_per_step, compute_dtype=jnp.float32):
    """Lane-dense entry (no layout plumbing).

    x3: (nc, IN_PAD, CH) with the batch on the lane axis (CH a multiple of 128,
        feature rows >= IN_DIM zero).  Returns the (nc, OUT_PAD, CH) f32 y^T slab.
    Producers/consumers that speak this layout skip the HBM transpose round trips.
    """
    nc, in_pad, ch = x3.shape
    assert in_pad == IN_PAD and ch % 128 == 0 and nc % chunks_per_step == 0
    slabs = _build_param_slabs(params, compute_dtype)
    const2 = lambda i: (0, 0)
    const3 = lambda i: (0, 0, 0)
    return pl.pallas_call(
        net_kernel,
        out_shape=jax.ShapeDtypeStruct((nc, OUT_PAD, ch), jnp.float32),
        grid=(nc // chunks_per_step,),
        in_specs=[
            pl.BlockSpec((H_PAD, IN_PAD), const2),               # W0        (resident)
            pl.BlockSpec((2, H_PAD, H_PAD), const3),             # W1, W2    (resident)
            pl.BlockSpec((3, H_PAD, 1), const3),                 # b0,b1,b2  (resident)
            pl.BlockSpec((OUT_PAD, IN_PAD), const2),             # W3[:, x]  (resident)
            pl.BlockSpec((2, OUT_PAD, H_PAD), const3),           # W3[:, h1/h3]
            pl.BlockSpec((OUT_PAD, 1), const2),                  # b3
            pl.BlockSpec((chunks_per_step, IN_PAD, ch), lambda i: (i, 0, 0)),
        ],
        out_specs=pl.BlockSpec((chunks_per_step, OUT_PAD, ch), lambda i: (i, 0, 0)),
        compiler_params=pltpu.CompilerParams(
            dimension_semantics=("parallel",),
            # <= ~48 MiB keeps v7x's 64 MiB VMEM safe while double-buffering
            # 64K-lane tiles on every generation.
            vmem_limit_bytes=48 * 1024 * 1024),
    )(*slabs, x3.astype(compute_dtype))


# -------------------------- torch-shaped compatibility wrapper --------------------
def net_forward(x, params, *, chunk=CHUNK_DEFAULT,
                max_chunks_per_step=MAX_CHUNKS_PER_STEP,
                compute_dtype=jnp.float32):
    """x: (B, 5) f32; params torch-style (out,in).  Returns (B, 7) f32 == Net.forward.

    TODO(synk): the pad/transpose into the chunked lane-dense slab and the final
    slice/transpose back are wrapper-side HBM round trips; a pipeline that speaks
    the (nc, 8, CH) layout should call net_forward_lanes directly and skip them.
    """
    B = x.shape[0]

    nc = max(1, pl.cdiv(B, chunk))                        # chunks covering the batch
    # >= 2 grid steps when possible (v7x megacore uses both TensorCores); cap the
    # per-step tile at max_chunks_per_step * chunk lanes (default 65536).
    nsteps = 1 if nc == 1 else max(2, pl.cdiv(nc, max_chunks_per_step))
    ncp = pl.cdiv(nc, nsteps)                             # chunks per grid step
    nc_pad = ncp * nsteps
    Bp = nc_pad * chunk

    xt = jnp.zeros((IN_PAD, Bp), compute_dtype).at[:IN_DIM, :B].set(
        x.T.astype(compute_dtype))
    x3 = xt.reshape(IN_PAD, nc_pad, chunk).transpose(1, 0, 2)     # (nc_pad, 8, chunk)

    out3 = net_forward_lanes(x3, params, chunks_per_step=ncp,
                             compute_dtype=compute_dtype)          # (nc_pad, 8, chunk)

    yt = out3.transpose(1, 0, 2).reshape(OUT_PAD, Bp)
    return yt[:OUT_DIM, :B].T


# ---------------------------- deterministic param init ---------------------------
def init_params(key):
    params = []
    for fan_in, fan_out in UNIT_LIST:
        kw, kb, key = jax.random.split(key, 3)
        bound = float(fan_in) ** -0.5
        w = jax.random.uniform(kw, (fan_out, fan_in), jnp.float32, -bound, bound)
        b = jax.random.uniform(kb, (fan_out,), jnp.float32, -bound, bound)
        params.extend([w, b])
    return tuple(params)


# ------------------------------- pure-JAX reference -------------------------------
def net_reference(x, params):
    w0, b0, w1, b1, w2, b2, w3, b3 = params
    h1 = jax.nn.relu(x @ w0.T + b0)
    h2 = jax.nn.relu(h1 @ w1.T + b1)
    h3 = jax.nn.relu(h2 @ w2.T + b2)
    cat = jnp.concatenate([x, h1, h3], axis=1)   # skip buffers first, then current out
    return cat @ w3.T + b3


if __name__ == "__main__":
    key = jax.random.PRNGKey(0)
    kx1, kx2, kp = jax.random.split(key, 3)
    params = init_params(kp)

    fwd = jax.jit(net_forward,
                  static_argnames=("chunk", "max_chunks_per_step", "compute_dtype"))

    # Small shape consistent with the module (batch=8, input=5).
    x1 = jax.random.normal(kx1, (8, IN_DIM), jnp.float32)
    out1 = fwd(x1, params)
    jax.block_until_ready(out1)
    assert out1.shape == (8, OUT_DIM) and out1.dtype == jnp.float32
    ref1 = net_reference(x1, params)
    assert jnp.allclose(out1, ref1, rtol=1e-4, atol=1e-4), "mismatch vs reference (B=8)"

    # Multi-step grid + multi-chunk inner loop + ragged batch padding:
    # chunk=128 -> 3 real chunks, 2 grid steps of 2 chunks (4th chunk is zero pad).
    x2 = jax.random.normal(kx2, (300, IN_DIM), jnp.float32)
    out2 = fwd(x2, params, chunk=128)
    jax.block_until_ready(out2)
    ref2 = net_reference(x2, params)
    assert out2.shape == (300, OUT_DIM)
    assert jnp.allclose(out2, ref2, rtol=1e-4, atol=1e-4), "mismatch vs reference (B=300)"

    # Optional bandwidth-saving bf16 path (f32 accumulation / bias / ReLU).
    out3 = fwd(x2, params, chunk=128, compute_dtype=jnp.bfloat16)
    jax.block_until_ready(out3)
    assert jnp.allclose(out3, ref2, rtol=5e-2, atol=5e-2), "mismatch vs reference (bf16)"

    print("KERNEL_OK")
</pallas_src>

<mosaic_0001>
module attributes {stable_mosaic.version = 11 : i64} {
  func.func @net_kernel(%arg0: i32, %arg1: memref<16x8xf32, #tpu.memory_space<vmem>>, %arg2: memref<2x16x16xf32, #tpu.memory_space<vmem>>, %arg3: memref<3x16x1xf32, #tpu.memory_space<vmem>>, %arg4: memref<8x8xf32, #tpu.memory_space<vmem>>, %arg5: memref<2x8x16xf32, #tpu.memory_space<vmem>>, %arg6: memref<8x1xf32, #tpu.memory_space<vmem>>, %arg7: memref<1x8x512xf32, #tpu.memory_space<vmem>>, %arg8: memref<1x8x512xf32, #tpu.memory_space<vmem>>) attributes {dimension_semantics = [#tpu.dimension_semantics<parallel>], iteration_bounds = array<i64: 1>, scalar_prefetch = 0 : i64, scratch_operands = 0 : i64, tpu.core_type = #tpu.core_type<tc>, window_params = [{pipeline_mode = #tpu.pipeline_mode<synchronous>, transform_indices = @transform_0, window_bounds = array<i64: 16, 8>}, {pipeline_mode = #tpu.pipeline_mode<synchronous>, transform_indices = @transform_1, window_bounds = array<i64: 2, 16, 16>}, {pipeline_mode = #tpu.pipeline_mode<synchronous>, transform_indices = @transform_2, window_bounds = array<i64: 3, 16, 1>}, {pipeline_mode = #tpu.pipeline_mode<synchronous>, transform_indices = @transform_3, window_bounds = array<i64: 8, 8>}, {pipeline_mode = #tpu.pipeline_mode<synchronous>, transform_indices = @transform_4, window_bounds = array<i64: 2, 8, 16>}, {pipeline_mode = #tpu.pipeline_mode<synchronous>, transform_indices = @transform_5, window_bounds = array<i64: 8, 1>}, {transform_indices = @transform_6, window_bounds = array<i64: 1, 8, 512>}, {transform_indices = @transform_7, window_bounds = array<i64: 1, 8, 512>}]} {
    %c0 = arith.constant 0 : index
    %c0_0 = arith.constant 0 : index
    %0 = vector.load %arg1[%c0, %c0_0] : memref<16x8xf32, #tpu.memory_space<vmem>>, vector<16x8xf32>
    %c0_1 = arith.constant 0 : index
    %c0_2 = arith.constant 0 : index
    %c0_3 = arith.constant 0 : index
    %1 = vector.load %arg2[%c0_1, %c0_2, %c0_3] : memref<2x16x16xf32, #tpu.memory_space<vmem>>, vector<1x16x16xf32>
    %2 = vector.shape_cast %1 : vector<1x16x16xf32> to vector<16x16xf32>
    %c1 = arith.constant 1 : index
    %c0_4 = arith.constant 0 : index
    %c0_5 = arith.constant 0 : index
    %3 = vector.load %arg2[%c1, %c0_4, %c0_5] : memref<2x16x16xf32, #tpu.memory_space<vmem>>, vector<1x16x16xf32>
    %4 = vector.shape_cast %3 : vector<1x16x16xf32> to vector<16x16xf32>
    %c0_6 = arith.constant 0 : index
    %c0_7 = arith.constant 0 : index
    %c0_8 = arith.constant 0 : index
    %5 = vector.load %arg3[%c0_6, %c0_7, %c0_8] : memref<3x16x1xf32, #tpu.memory_space<vmem>>, vector<1x16x1xf32>
    %6 = vector.shape_cast %5 : vector<1x16x1xf32> to vector<16x1xf32>
    %c1_9 = arith.constant 1 : index
    %c0_10 = arith.constant 0 : index
    %c0_11 = arith.constant 0 : index
    %7 = vector.load %arg3[%c1_9, %c0_10, %c0_11] : memref<3x16x1xf32, #tpu.memory_space<vmem>>, vector<1x16x1xf32>
    %8 = vector.shape_cast %7 : vector<1x16x1xf32> to vector<16x1xf32>
    %c2 = arith.constant 2 : index
    %c0_12 = arith.constant 0 : index
    %c0_13 = arith.constant 0 : index
    %9 = vector.load %arg3[%c2, %c0_12, %c0_13] : memref<3x16x1xf32, #tpu.memory_space<vmem>>, vector<1x16x1xf32>
    %10 = vector.shape_cast %9 : vector<1x16x1xf32> to vector<16x1xf32>
    %c0_14 = arith.constant 0 : index
    %c0_15 = arith.constant 0 : index
    %11 = vector.load %arg4[%c0_14, %c0_15] : memref<8x8xf32, #tpu.memory_space<vmem>>, vector<8x8xf32>
    %c0_16 = arith.constant 0 : index
    %c0_17 = arith.constant 0 : index
    %c0_18 = arith.constant 0 : index
    %12 = vector.load %arg5[%c0_16, %c0_17, %c0_18] : memref<2x8x16xf32, #tpu.memory_space<vmem>>, vector<1x8x16xf32>
    %13 = vector.shape_cast %12 : vector<1x8x16xf32> to vector<8x16xf32>
    %c1_19 = arith.constant 1 : index
    %c0_20 = arith.constant 0 : index
    %c0_21 = arith.constant 0 : index
    %14 = vector.load %arg5[%c1_19, %c0_20, %c0_21] : memref<2x8x16xf32, #tpu.memory_space<vmem>>, vector<1x8x16xf32>
    %15 = vector.shape_cast %14 : vector<1x8x16xf32> to vector<8x16xf32>
    %c0_22 = arith.constant 0 : index
    %c0_23 = arith.constant 0 : index
    %16 = vector.load %arg6[%c0_22, %c0_23] : memref<8x1xf32, #tpu.memory_space<vmem>>, vector<8x1xf32>
    %c0_i32 = arith.constant 0 : i32
    %17 = arith.index_cast %c0_i32 : i32 to index
    %c0_24 = arith.constant 0 : index
    %c0_25 = arith.constant 0 : index
    %18 = vector.load %arg7[%17, %c0_24, %c0_25] : memref<1x8x512xf32, #tpu.memory_space<vmem>>, vector<1x8x512xf32>
    %19 = vector.shape_cast %18 : vector<1x8x512xf32> to vector<8x512xf32>
    %cst = arith.constant dense<0.000000e+00> : vector<16x512xf32>
    %20 = tpu.matmul %0, %19, %cst {dimension_numbers = #tpu.dot_dimension_numbers<[1], [0], [0], [1], [0, 0, 1, 1], [], []>} : vector<16x8xf32>, vector<8x512xf32>, vector<16x512xf32> -> vector<16x512xf32>
    %21 = vector.broadcast %6 : vector<16x1xf32> to vector<16x512xf32>
    %22 = arith.addf %20, %21 : vector<16x512xf32>
    %cst_26 = arith.constant 0.000000e+00 : f32
    %23 = vector.broadcast %cst_26 : f32 to vector<16x512xf32>
    %24 = arith.maximumf %22, %23 : vector<16x512xf32>
    %cst_27 = arith.constant dense<0.000000e+00> : vector<16x512xf32>
    %25 = tpu.matmul %2, %24, %cst_27 {dimension_numbers = #tpu.dot_dimension_numbers<[1], [0], [0], [1], [0, 0, 1, 1], [], []>} : vector<16x16xf32>, vector<16x512xf32>, vector<16x512xf32> -> vector<16x512xf32>
    %26 = vector.broadcast %8 : vector<16x1xf32> to vector<16x512xf32>
    %27 = arith.addf %25, %26 : vector<16x512xf32>
    %cst_28 = arith.constant 0.000000e+00 : f32
    %28 = vector.broadcast %cst_28 : f32 to vector<16x512xf32>
    %29 = arith.maximumf %27, %28 : vector<16x512xf32>
    %cst_29 = arith.constant dense<0.000000e+00> : vector<16x512xf32>
    %30 = tpu.matmul %4, %29, %cst_29 {dimension_numbers = #tpu.dot_dimension_numbers<[1], [0], [0], [1], [0, 0, 1, 1], [], []>} : vector<16x16xf32>, vector<16x512xf32>, vector<16x512xf32> -> vector<16x512xf32>
    %31 = vector.broadcast %10 : vector<16x1xf32> to vector<16x512xf32>
    %32 = arith.addf %30, %31 : vector<16x512xf32>
    %cst_30 = arith.constant 0.000000e+00 : f32
    %33 = vector.broadcast %cst_30 : f32 to vector<16x512xf32>
    %34 = arith.maximumf %32, %33 : vector<16x512xf32>
    %cst_31 = arith.constant dense<0.000000e+00> : vector<8x512xf32>
    %35 = tpu.matmul %11, %19, %cst_31 {dimension_numbers = #tpu.dot_dimension_numbers<[1], [0], [0], [1], [0, 0, 1, 1], [], []>} : vector<8x8xf32>, vector<8x512xf32>, vector<8x512xf32> -> vector<8x512xf32>
    %cst_32 = arith.constant dense<0.000000e+00> : vector<8x512xf32>
    %36 = tpu.matmul %13, %24, %cst_32 {dimension_numbers = #tpu.dot_dimension_numbers<[1], [0], [0], [1], [0, 0, 1, 1], [], []>} : vector<8x16xf32>, vector<16x512xf32>, vector<8x512xf32> -> vector<8x512xf32>
    %37 = arith.addf %35, %36 : vector<8x512xf32>
    %cst_33 = arith.constant dense<0.000000e+00> : vector<8x512xf32>
    %38 = tpu.matmul %15, %34, %cst_33 {dimension_numbers = #tpu.dot_dimension_numbers<[1], [0], [0], [1], [0, 0, 1, 1], [], []>} : vector<8x16xf32>, vector<16x512xf32>, vector<8x512xf32> -> vector<8x512xf32>
    %39 = arith.addf %37, %38 : vector<8x512xf32>
    %40 = vector.broadcast %16 : vector<8x1xf32> to vector<8x512xf32>
    %41 = arith.addf %39, %40 : vector<8x512xf32>
    %42 = arith.index_cast %c0_i32 : i32 to index
    %c0_34 = arith.constant 0 : index
    %c0_35 = arith.constant 0 : index
    %43 = vector.load %arg8[%42, %c0_34, %c0_35] : memref<1x8x512xf32, #tpu.memory_space<vmem>>, vector<1x8x512xf32>
    %44 = vector.shape_cast %43 : vector<1x8x512xf32> to vector<8x512xf32>
    %45 = vector.shape_cast %41 : vector<8x512xf32> to vector<1x8x512xf32>
    tpu.vector_store %arg8[%42, %c0_34, %c0_35], %45 {strides = array<i32>} : memref<1x8x512xf32, #tpu.memory_space<vmem>>, vector<1x8x512xf32>,
    %c1_i32 = arith.constant 1 : i32
    return
  }
  func.func @transform_0(%arg0: i32) -> (i32, i32) {
    %c0_i32 = arith.constant 0 : i32
    %c0_i32_0 = arith.constant 0 : i32
    %c0_i32_1 = arith.constant 0 : i32
    return %c0_i32, %c0_i32_0 : i32, i32
  }
  func.func @transform_1(%arg0: i32) -> (i32, i32, i32) {
    %c0_i32 = arith.constant 0 : i32
    %c0_i32_0 = arith.constant 0 : i32
    %c0_i32_1 = arith.constant 0 : i32
    %c0_i32_2 = arith.constant 0 : i32
    return %c0_i32, %c0_i32_0, %c0_i32_1 : i32, i32, i32
  }
  func.func @transform_2(%arg0: i32) -> (i32, i32, i32) {
    %c0_i32 = arith.constant 0 : i32
    %c0_i32_0 = arith.constant 0 : i32
    %c0_i32_1 = arith.constant 0 : i32
    %c0_i32_2 = arith.constant 0 : i32
    return %c0_i32, %c0_i32_0, %c0_i32_1 : i32, i32, i32
  }
  func.func @transform_3(%arg0: i32) -> (i32, i32) {
    %c0_i32 = arith.constant 0 : i32
    %c0_i32_0 = arith.constant 0 : i32
    %c0_i32_1 = arith.constant 0 : i32
    return %c0_i32, %c0_i32_0 : i32, i32
  }
  func.func @transform_4(%arg0: i32) -> (i32, i32, i32) {
    %c0_i32 = arith.constant 0 : i32
    %c0_i32_0 = arith.constant 0 : i32
    %c0_i32_1 = arith.constant 0 : i32
    %c0_i32_2 = arith.constant 0 : i32
    return %c0_i32, %c0_i32_0, %c0_i32_1 : i32, i32, i32
  }
  func.func @transform_5(%arg0: i32) -> (i32, i32) {
    %c0_i32 = arith.constant 0 : i32
    %c0_i32_0 = arith.constant 0 : i32
    %c0_i32_1 = arith.constant 0 : i32
    return %c0_i32, %c0_i32_0 : i32, i32
  }
  func.func @transform_6(%arg0: i32) -> (i32, i32, i32) {
    %c0_i32 = arith.constant 0 : i32
    %c0_i32_0 = arith.constant 0 : i32
    %c0_i32_1 = arith.constant 0 : i32
    return %arg0, %c0_i32, %c0_i32_0 : i32, i32, i32
  }
  func.func @transform_7(%arg0: i32) -> (i32, i32, i32) {
    %c0_i32 = arith.constant 0 : i32
    %c0_i32_0 = arith.constant 0 : i32
    %c0_i32_1 = arith.constant 0 : i32
    return %arg0, %c0_i32, %c0_i32_0 : i32, i32, i32
  }
}

</mosaic_0001>

<llo_original>
// kernel: net_forward.1
$region0: #{net_forward.1}
  #allocation0 [shape = 'u32[]', space=smem, size = 0x4, offset = 0x4, fixed_abs, tag = 'smem constant byte address 0x4 - core index']
  #allocation1 [shape = 'u32[144,128]{1,0:T(1,128)}', space=vmem, size = 0x12000, scoped, tag = 'internal scratch']
  %s0 = inlined_call_operand.vmem [shape: f32[16,8], index: 0, kind: input, shape index: {}]
  %s1 = inlined_call_operand.vmem [shape: f32[2,16,16], index: 1, kind: input, shape index: {}]
  %s2 = inlined_call_operand.vmem [shape: f32[3,16,1], index: 2, kind: input, shape index: {}]
  %s3 = inlined_call_operand.vmem [shape: f32[8,8], index: 3, kind: input, shape index: {}]
  %s4 = inlined_call_operand.vmem [shape: f32[2,8,16], index: 4, kind: input, shape index: {}]
  %s5 = inlined_call_operand.vmem [shape: f32[8,1], index: 5, kind: input, shape index: {}]
  %s6 = inlined_call_operand.vmem [shape: f32[1,8,512], index: 6, kind: input, shape index: {}]
  %s7 = inlined_call_operand.vmem [shape: f32[1,8,512], index: 7, kind: output, shape index: {}]
  %s8 = sld [smem:[#allocation0]]
  $region38: #{net_forward.1} parent=0
    _
  %s10 = ssub.s32 1, %s8
  %s11 = scalar_select 0, %s10, %s8
  // Predicated region
  $region2: #{net_forward.1} parent=0 // pred_check
    _
  $region3: #{net_forward.1} parent=0 // pred_check_branch
    %13 = sbr.rel (0) target = $region5
  $region4: #{net_forward.1} parent=0 // pred_region
    _
  $region5: #{net_forward.1} parent=0 // pred_fallthru
    _
  // Predicated region
  $region6: #{net_forward.1} parent=0 // pred_check
    _
  $region7: #{net_forward.1} parent=0 // pred_check_branch
    %15 = sbr.rel (0) target = $region9
  $region8: #{net_forward.1} parent=0 // pred_region
    _
  $region9: #{net_forward.1} parent=0 // pred_fallthru
    _
  // Predicated region
  $region10: #{net_forward.1} parent=0 // pred_check
    _
  $region11: #{net_forward.1} parent=0 // pred_check_branch
    %17 = sbr.rel (0) target = $region13
  $region12: #{net_forward.1} parent=0 // pred_region
    _
  $region13: #{net_forward.1} parent=0 // pred_fallthru
    _
  // Predicated region
  $region14: #{net_forward.1} parent=0 // pred_check
    _
  $region15: #{net_forward.1} parent=0 // pred_check_branch
    %19 = sbr.rel (0) target = $region17
  $region16: #{net_forward.1} parent=0 // pred_region
    _
  $region17: #{net_forward.1} parent=0 // pred_fallthru
    _
  // Predicated region
  $region18: #{net_forward.1} parent=0 // pred_check
    _
  $region19: #{net_forward.1} parent=0 // pred_check_branch
    %21 = sbr.rel (0) target = $region21
  $region20: #{net_forward.1} parent=0 // pred_region
    _
  $region21: #{net_forward.1} parent=0 // pred_fallthru
    _
  // Predicated region
  $region22: #{net_forward.1} parent=0 // pred_check
    _
  $region23: #{net_forward.1} parent=0 // pred_check_branch
    %23 = sbr.rel (0) target = $region25
  $region24: #{net_forward.1} parent=0 // pred_region
    _
  $region25: #{net_forward.1} parent=0 // pred_fallthru
    _
  // Predicated region
  $region26: #{net_forward.1} parent=0 // pred_check
    _
  $region27: #{net_forward.1} parent=0 // pred_check_branch
    %25 = sbr.rel (0) target = $region29
  $region28: #{net_forward.1} parent=0 // pred_region
    _
  $region29: #{net_forward.1} parent=0 // pred_fallthru
    _
  %v26 = vld [vmem:[%s0] sm:$0xff]
  %v27 = vld [vmem:[%s0 + $0x8] sm:$0xff]
  %v28 = vld [vmem:[%s1] sm:$0xff]
  %v29 = vld [vmem:[%s1 + $0x8] sm:$0xff]
  %s30 = scalar_lea.vmem %s1, 16
  %v31 = vld [vmem:[%s30] sm:$0xff]
  %v32 = vld [vmem:[%s30 + $0x8] sm:$0xff]
  %v33 = vld [vmem:[%s2] sm:$0xff]
  %v34 = vld [vmem:[%s2 + $0x8] sm:$0xff]
  %s35 = scalar_lea.vmem %s2, 16
  %v36 = vld [vmem:[%s35] sm:$0xff]
  %v37 = vld [vmem:[%s35 + $0x8] sm:$0xff]
  %s38 = scalar_lea.vmem %s2, 32
  %v39 = vld [vmem:[%s38] sm:$0xff]
  %v40 = vld [vmem:[%s38 + $0x8] sm:$0xff]
  %v41 = vld [vmem:[%s3] sm:$0xff]
  %v42 = vld [vmem:[%s4] sm:$0xff]
  %s43 = scalar_lea.vmem %s4, 8
  %v44 = vld [vmem:[%s43] sm:$0xff]
  %v45 = vld [vmem:[%s5] sm:$0xff]
  %v46 = vld [vmem:[%s6] sm:$0xff]
  %v47 = vld [vmem:[%s6 + $0x8] sm:$0xff]
  %v48 = vld [vmem:[%s6 + $0x10] sm:$0xff]
  %v49 = vld [vmem:[%s6 + $0x18] sm:$0xff]
  %51 = vset.pattern.permute.xlu0 0
  %52 = vperm.xlu0 %51, %v33
  %v53 = vpop.permute.xlu0 %52
  %56 = vset.pattern.permute.xlu0 0
  %57 = vperm.xlu0 %56, %v34
  %v58 = vpop.permute.xlu0 %57
  %vm60 = vcmask 64512
  %v62 = vsel %vm60, %v26, 0
  %v65 = vsel %vm60, %v27, 0
  %67 = vmatprep.subr.mxu0 0.0
  %68 = vmatpush1.msra.mxu0 0.0
  %69 = vmatprep.subr.mxu0 0.0
  %70 = vmatpush1.msra.mxu0 0.0
  %71 = vmatprep.subr.mxu0 0.0
  %72 = vmatpush1.msra.mxu0 0.0
  %73 = vmatprep.subr.mxu0 0.0
  %74 = vmatpush1.msra.mxu0 0.0
  %75 = vmatprep.subr.mxu0 0.0
  %76 = vmatpush1.msra.mxu0 0.0
  %77 = vmatprep.subr.mxu0 0.0
  %78 = vmatpush1.msra.mxu0 0.0
  %79 = vmatprep.subr.mxu0 0.0
  %80 = vmatpush1.msra.mxu0 0.0
  %81 = vmatprep.subr.mxu0 0.0
  %82 = vmatpush1.msra.mxu0 0.0
  %83 = vmatprep.subr.mxu0 0.0
  %84 = vmatpush1.msra.mxu0 0.0
  %85 = vmatprep.subr.mxu0 0.0
  %86 = vmatpush1.msra.mxu0 0.0
  %87 = vmatprep.subr.mxu0 0.0
  %88 = vmatpush1.msra.mxu0 0.0
  %89 = vmatprep.subr.mxu0 0.0
  %90 = vmatpush1.msra.mxu0 0.0
  %91 = vmatprep.subr.mxu0 0.0
  %92 = vmatpush1.msra.mxu0 0.0
  %93 = vmatprep.subr.mxu0 0.0
  %94 = vmatpush1.msra.mxu0 0.0
  %95 = vmatprep.subr.mxu0 0.0
  %96 = vmatpush1.msra.mxu0 0.0
  %97 = vmatprep.subr.mxu0 %v47
  %98 = vmatpush1.msra.mxu0 %v46
  %99 = vmatprep.subr.mxu0 0.0
  %100 = vmatpush2.msra.mxu0 0.0
  %101 = vmatprep.subr.mxu0 0.0
  %102 = vmatpush2.msra.mxu0 0.0
  %103 = vmatprep.subr.mxu0 0.0
  %104 = vmatpush2.msra.mxu0 0.0
  %105 = vmatprep.subr.mxu0 0.0
  %106 = vmatpush2.msra.mxu0 0.0
  %107 = vmatprep.subr.mxu0 0.0
  %108 = vmatpush2.msra.mxu0 0.0
  %109 = vmatprep.subr.mxu0 0.0
  %110 = vmatpush2.msra.mxu0 0.0
  %111 = vmatprep.subr.mxu0 0.0
  %112 = vmatpush2.msra.mxu0 0.0
  %113 = vmatprep.subr.mxu0 0.0
  %114 = vmatpush2.msra.mxu0 0.0
  %115 = vmatprep.subr.mxu0 0.0
  %116 = vmatpush2.msra.mxu0 0.0
  %117 = vmatprep.subr.mxu0 0.0
  %118 = vmatpush2.msra.mxu0 0.0
  %119 = vmatprep.subr.mxu0 0.0
  %120 = vmatpush2.msra.mxu0 0.0
  %121 = vmatprep.subr.mxu0 0.0
  %122 = vmatpush2.msra.mxu0 0.0
  %123 = vmatprep.subr.mxu0 0.0
  %124 = vmatpush2.msra.mxu0 0.0
  %125 = vmatprep.subr.mxu0 0.0
  %126 = vmatpush2.msra.mxu0 0.0
  %127 = vmatprep.subr.mxu0 0.0
  %128 = vmatpush2.msra.mxu0 0.0
  %129 = vmatprep.subr.mxu0 0.0
  %130 = vmatpush2.msra.mxu0 0.0
  %131 = vmatprep.mubr.f32.mxu0 0.0
  %132 = vmatmul.mubr.f32.gmra.mxu0 %v62
  %v133 = vpop.f32.mrf.mxu0
  %v134 = vadd.f32 %v53, %v133
  %v135 = vpop.f32.mrf.mxu0
  %v136 = vadd.f32 %v53, %v135
  %137 = vmatprep.mubr.f32.mxu0 0.0
  %138 = vmatmul.mubr.f32.gmra.mxu0 %v65
  %v139 = vpop.f32.mrf.mxu0
  %v140 = vadd.f32 %v58, %v139
  %v141 = vpop.f32.mrf.mxu0
  %v142 = vadd.f32 %v58, %v141
  %143 = vdwg.mxu0
  %144 = vmatprep.subr.mxu0 0.0
  %145 = vmatpush1.msra.mxu0 0.0
  %146 = vmatprep.subr.mxu0 0.0
  %147 = vmatpush1.msra.mxu0 0.0
  %148 = vmatprep.subr.mxu0 0.0
  %149 = vmatpush1.msra.mxu0 0.0
  %150 = vmatprep.subr.mxu0 0.0
  %151 = vmatpush1.msra.mxu0 0.0
  %152 = vmatprep.subr.mxu0 0.0
  %153 = vmatpush1.msra.mxu0 0.0
  %154 = vmatprep.subr.mxu0 0.0
  %155 = vmatpush1.msra.mxu0 0.0
  %156 = vmatprep.subr.mxu0 0.0
  %157 = vmatpush1.msra.mxu0 0.0
  %158 = vmatprep.subr.mxu0 0.0
  %159 = vmatpush1.msra.mxu0 0.0
  %160 = vmatprep.subr.mxu0 0.0
  %161 = vmatpush1.msra.mxu0 0.0
  %162 = vmatprep.subr.mxu0 0.0
  %163 = vmatpush1.msra.mxu0 0.0
  %164 = vmatprep.subr.mxu0 0.0
  %165 = vmatpush1.msra.mxu0 0.0
  %166 = vmatprep.subr.mxu0 0.0
  %167 = vmatpush1.msra.mxu0 0.0
  %168 = vmatprep.subr.mxu0 0.0
  %169 = vmatpush1.msra.mxu0 0.0
  %170 = vmatprep.subr.mxu0 0.0
  %171 = vmatpush1.msra.mxu0 0.0
  %172 = vmatprep.subr.mxu0 0.0
  %173 = vmatpush1.msra.mxu0 0.0
  %174 = vmatprep.subr.mxu0 %v49
  %175 = vmatpush1.msra.mxu0 %v48
  %176 = vmatprep.subr.mxu0 0.0
  %177 = vmatpush2.msra.mxu0 0.0
  %178 = vmatprep.subr.mxu0 0.0
  %179 = vmatpush2.msra.mxu0 0.0
  %180 = vmatprep.subr.mxu0 0.0
  %181 = vmatpush2.msra.mxu0 0.0
  %182 = vmatprep.subr.mxu0 0.0
  %183 = vmatpush2.msra.mxu0 0.0
  %184 = vmatprep.subr.mxu0 0.0
  %185 = vmatpush2.msra.mxu0 0.0
  %186 = vmatprep.subr.mxu0 0.0
  %187 = vmatpush2.msra.mxu0 0.0
  %188 = vmatprep.subr.mxu0 0.0
  %189 = vmatpush2.msra.mxu0 0.0
  %190 = vmatprep.subr.mxu0 0.0
  %191 = vmatpush2.msra.mxu0 0.0
  %192 = vmatprep.subr.mxu0 0.0
  %193 = vmatpush2.msra.mxu0 0.0
  %194 = vmatprep.subr.mxu0 0.0
  %195 = vmatpush2.msra.mxu0 0.0
  %196 = vmatprep.subr.mxu0 0.0
  %197 = vmatpush2.msra.mxu0 0.0
  %198 = vmatprep.subr.mxu0 0.0
  %199 = vmatpush2.msra.mxu0 0.0
  %200 = vmatprep.subr.mxu0 0.0
  %201 = vmatpush2.msra.mxu0 0.0
  %202 = vmatprep.subr.mxu0 0.0
  %203 = vmatpush2.msra.mxu0 0.0
  %204 = vmatprep.subr.mxu0 0.0
  %205 = vmatpush2.msra.mxu0 0.0
  %206 = vmatprep.subr.mxu0 0.0
  %207 = vmatpush2.msra.mxu0 0.0
  %208 = vmatprep.mubr.f32.mxu0 0.0
  %209 = vmatmul.mubr.f32.gmra.mxu0 %v62
  %v210 = vpop.f32.mrf.mxu0
  %v211 = vadd.f32 %v53, %v210
  %v212 = vpop.f32.mrf.mxu0
  %v213 = vadd.f32 %v53, %v212
  %214 = vmatprep.mubr.f32.mxu0 0.0
  %215 = vmatmul.mubr.f32.gmra.mxu0 %v65
  %v216 = vpop.f32.mrf.mxu0
  %v217 = vadd.f32 %v58, %v216
  %v218 = vpop.f32.mrf.mxu0
  %v219 = vadd.f32 %v58, %v218
  %220 = vdwg.mxu0
  %v221 = vmax.f32 %v134, 0.0
  %v222 = vmax.f32 %v136, 0.0
  %v223 = vmax.f32 %v211, 0.0
  %v224 = vmax.f32 %v213, 0.0
  %v225 = vmax.f32 %v140, 0.0
  %v226 = vmax.f32 %v142, 0.0
  %v227 = vmax.f32 %v217, 0.0
  %v228 = vmax.f32 %v219, 0.0
  %230 = vset.pattern.permute.xlu0 0
  %231 = vperm.xlu0 %230, %v36
  %v232 = vpop.permute.xlu0 %231
  %235 = vset.pattern.permute.xlu0 0
  %236 = vperm.xlu0 %235, %v37
  %v237 = vpop.permute.xlu0 %236
  %vm239 = vcmask 130048
  %v241 = vsel %vm239, %v28, 0
  %v244 = vsel %vm239, %v29, 0
  %246 = vmatprep.subr.mxu0 0.0
  %247 = vmatpush1.msra.mxu0 0.0
  %248 = vmatprep.subr.mxu0 0.0
  %249 = vmatpush1.msra.mxu0 0.0
  %250 = vmatprep.subr.mxu0 0.0
  %251 = vmatpush1.msra.mxu0 0.0
  %252 = vmatprep.subr.mxu0 0.0
  %253 = vmatpush1.msra.mxu0 0.0
  %254 = vmatprep.subr.mxu0 0.0
  %255 = vmatpush1.msra.mxu0 0.0
  %256 = vmatprep.subr.mxu0 0.0
  %257 = vmatpush1.msra.mxu0 0.0
  %258 = vmatprep.subr.mxu0 0.0
  %259 = vmatpush1.msra.mxu0 0.0
  %260 = vmatprep.subr.mxu0 0.0
  %261 = vmatpush1.msra.mxu0 0.0
  %262 = vmatprep.subr.mxu0 0.0
  %263 = vmatpush1.msra.mxu0 0.0
  %264 = vmatprep.subr.mxu0 0.0
  %265 = vmatpush1.msra.mxu0 0.0
  %266 = vmatprep.subr.mxu0 0.0
  %267 = vmatpush1.msra.mxu0 0.0
  %268 = vmatprep.subr.mxu0 0.0
  %269 = vmatpush1.msra.mxu0 0.0
  %270 = vmatprep.subr.mxu0 0.0
  %271 = vmatpush1.msra.mxu0 0.0
  %272 = vmatprep.subr.mxu0 0.0
  %273 = vmatpush1.msra.mxu0 0.0
  %274 = vmatprep.subr.mxu0 %v226
  %275 = vmatpush1.msra.mxu0 %v225
  %276 = vmatprep.subr.mxu0 %v222
  %277 = vmatpush1.msra.mxu0 %v221
  %278 = vmatprep.subr.mxu0 0.0
  %279 = vmatpush2.msra.mxu0 0.0
  %280 = vmatprep.subr.mxu0 0.0
  %281 = vmatpush2.msra.mxu0 0.0
  %282 = vmatprep.subr.mxu0 0.0
  %283 = vmatpush2.msra.mxu0 0.0
  %284 = vmatprep.subr.mxu0 0.0
  %285 = vmatpush2.msra.mxu0 0.0
  %286 = vmatprep.subr.mxu0 0.0
  %287 = vmatpush2.msra.mxu0 0.0
  %288 = vmatprep.subr.mxu0 0.0
  %289 = vmatpush2.msra.mxu0 0.0
  %290 = vmatprep.subr.mxu0 0.0
  %291 = vmatpush2.msra.mxu0 0.0
  %292 = vmatprep.subr.mxu0 0.0
  %293 = vmatpush2.msra.mxu0 0.0
  %294 = vmatprep.subr.mxu0 0.0
  %295 = vmatpush2.msra.mxu0 0.0
  %296 = vmatprep.subr.mxu0 0.0
  %297 = vmatpush2.msra.mxu0 0.0
  %298 = vmatprep.subr.mxu0 0.0
  %299 = vmatpush2.msra.mxu0 0.0
  %300 = vmatprep.subr.mxu0 0.0
  %301 = vmatpush2.msra.mxu0 0.0
  %302 = vmatprep.subr.mxu0 0.0
  %303 = vmatpush2.msra.mxu0 0.0
  %304 = vmatprep.subr.mxu0 0.0
  %305 = vmatpush2.msra.mxu0 0.0
  %306 = vmatprep.subr.mxu0 0.0
  %307 = vmatpush2.msra.mxu0 0.0
  %308 = vmatprep.subr.mxu0 0.0
  %309 = vmatpush2.msra.mxu0 0.0
  %310 = vmatprep.mubr.f32.mxu0 0.0
  %311 = vmatmul.mubr.f32.gmra.mxu0 %v241
  %v312 = vpop.f32.mrf.mxu0
  %v313 = vadd.f32 %v232, %v312
  %v314 = vpop.f32.mrf.mxu0
  %v315 = vadd.f32 %v232, %v314
  %316 = vmatprep.mubr.f32.mxu0 0.0
  %317 = vmatmul.mubr.f32.gmra.mxu0 %v244
  %v318 = vpop.f32.mrf.mxu0
  %v319 = vadd.f32 %v237, %v318
  %v320 = vpop.f32.mrf.mxu0
  %v321 = vadd.f32 %v237, %v320
  %322 = vdwg.mxu0
  %323 = vmatprep.subr.mxu0 0.0
  %324 = vmatpush1.msra.mxu0 0.0
  %325 = vmatprep.subr.mxu0 0.0
  %326 = vmatpush1.msra.mxu0 0.0
  %327 = vmatprep.subr.mxu0 0.0
  %328 = vmatpush1.msra.mxu0 0.0
  %329 = vmatprep.subr.mxu0 0.0
  %330 = vmatpush1.msra.mxu0 0.0
  %331 = vmatprep.subr.mxu0 0.0
  %332 = vmatpush1.msra.mxu0 0.0
  %333 = vmatprep.subr.mxu0 0.0
  %334 = vmatpush1.msra.mxu0 0.0
  %335 = vmatprep.subr.mxu0 0.0
  %336 = vmatpush1.msra.mxu0 0.0
  %337 = vmatprep.subr.mxu0 0.0
  %338 = vmatpush1.msra.mxu0 0.0
  %339 = vmatprep.subr.mxu0 0.0
  %340 = vmatpush1.msra.mxu0 0.0
  %341 = vmatprep.subr.mxu0 0.0
  %342 = vmatpush1.msra.mxu0 0.0
  %343 = vmatprep.subr.mxu0 0.0
  %344 = vmatpush1.msra.mxu0 0.0
  %345 = vmatprep.subr.mxu0 0.0
  %346 = vmatpush1.msra.mxu0 0.0
  %347 = vmatprep.subr.mxu0 0.0
  %348 = vmatpush1.msra.mxu0 0.0
  %349 = vmatprep.subr.mxu0 0.0
  %350 = vmatpush1.msra.mxu0 0.0
  %351 = vmatprep.subr.mxu0 %v228
  %352 = vmatpush1.msra.mxu0 %v227
  %353 = vmatprep.subr.mxu0 %v224
  %354 = vmatpush1.msra.mxu0 %v223
  %355 = vmatprep.subr.mxu0 0.0
  %356 = vmatpush2.msra.mxu0 0.0
  %357 = vmatprep.subr.mxu0 0.0
  %358 = vmatpush2.msra.mxu0 0.0
  %359 = vmatprep.subr.mxu0 0.0
  %360 = vmatpush2.msra.mxu0 0.0
  %361 = vmatprep.subr.mxu0 0.0
  %362 = vmatpush2.msra.mxu0 0.0
  %363 = vmatprep.subr.mxu0 0.0
  %364 = vmatpush2.msra.mxu0 0.0
  %365 = vmatprep.subr.mxu0 0.0
  %366 = vmatpush2.msra.mxu0 0.0
  %367 = vmatprep.subr.mxu0 0.0
  %368 = vmatpush2.msra.mxu0 0.0
  %369 = vmatprep.subr.mxu0 0.0
  %370 = vmatpush2.msra.mxu0 0.0
  %371 = vmatprep.subr.mxu0 0.0
  %372 = vmatpush2.msra.mxu0 0.0
  %373 = vmatprep.subr.mxu0 0.0
  %374 = vmatpush2.msra.mxu0 0.0
  %375 = vmatprep.subr.mxu0 0.0
  %376 = vmatpush2.msra.mxu0 0.0
  %377 = vmatprep.subr.mxu0 0.0
  %378 = vmatpush2.msra.mxu0 0.0
  %379 = vmatprep.subr.mxu0 0.0
  %380 = vmatpush2.msra.mxu0 0.0
  %381 = vmatprep.subr.mxu0 0.0
  %382 = vmatpush2.msra.mxu0 0.0
  %383 = vmatprep.subr.mxu0 0.0
  %384 = vmatpush2.msra.mxu0 0.0
  %385 = vmatprep.subr.mxu0 0.0
  %386 = vmatpush2.msra.mxu0 0.0
  %387 = vmatprep.mubr.f32.mxu0 0.0
  %388 = vmatmul.mubr.f32.gmra.mxu0 %v241
  %v389 = vpop.f32.mrf.mxu0
  %v390 = vadd.f32 %v232, %v389
  %v391 = vpop.f32.mrf.mxu0
  %v392 = vadd.f32 %v232, %v391
  %393 = vmatprep.mubr.f32.mxu0 0.0
  %394 = vmatmul.mubr.f32.gmra.mxu0 %v244
  %v395 = vpop.f32.mrf.mxu0
  %v396 = vadd.f32 %v237, %v395
  %v397 = vpop.f32.mrf.mxu0
  %v398 = vadd.f32 %v237, %v397
  %399 = vdwg.mxu0
  %v400 = vmax.f32 %v313, 0.0
  %v401 = vmax.f32 %v315, 0.0
  %v402 = vmax.f32 %v390, 0.0
  %v403 = vmax.f32 %v392, 0.0
  %v404 = vmax.f32 %v319, 0.0
  %v405 = vmax.f32 %v321, 0.0
  %v406 = vmax.f32 %v396, 0.0
  %v407 = vmax.f32 %v398, 0.0
  %409 = vset.pattern.permute.xlu0 0
  %410 = vperm.xlu0 %409, %v39
  %v411 = vpop.permute.xlu0 %410
  %414 = vset.pattern.permute.xlu0 0
  %415 = vperm.xlu0 %414, %v40
  %v416 = vpop.permute.xlu0 %415
  %v419 = vsel %vm239, %v31, 0
  %v422 = vsel %vm239, %v32, 0
  %424 = vmatprep.subr.mxu0 0.0
  %425 = vmatpush1.msra.mxu0 0.0
  %426 = vmatprep.subr.mxu0 0.0
  %427 = vmatpush1.msra.mxu0 0.0
  %428 = vmatprep.subr.mxu0 0.0
  %429 = vmatpush1.msra.mxu0 0.0
  %430 = vmatprep.subr.mxu0 0.0
  %431 = vmatpush1.msra.mxu0 0.0
  %432 = vmatprep.subr.mxu0 0.0
  %433 = vmatpush1.msra.mxu0 0.0
  %434 = vmatprep.subr.mxu0 0.0
  %435 = vmatpush1.msra.mxu0 0.0
  %436 = vmatprep.subr.mxu0 0.0
  %437 = vmatpush1.msra.mxu0 0.0
  %438 = vmatprep.subr.mxu0 0.0
  %439 = vmatpush1.msra.mxu0 0.0
  %440 = vmatprep.subr.mxu0 0.0
  %441 = vmatpush1.msra.mxu0 0.0
  %442 = vmatprep.subr.mxu0 0.0
  %443 = vmatpush1.msra.mxu0 0.0
  %444 = vmatprep.subr.mxu0 0.0
  %445 = vmatpush1.msra.mxu0 0.0
  %446 = vmatprep.subr.mxu0 0.0
  %447 = vmatpush1.msra.mxu0 0.0
  %448 = vmatprep.subr.mxu0 0.0
  %449 = vmatpush1.msra.mxu0 0.0
  %450 = vmatprep.subr.mxu0 0.0
  %451 = vmatpush1.msra.mxu0 0.0
  %452 = vmatprep.subr.mxu0 %v405
  %453 = vmatpush1.msra.mxu0 %v404
  %454 = vmatprep.subr.mxu0 %v401
  %455 = vmatpush1.msra.mxu0 %v400
  %456 = vmatprep.subr.mxu0 0.0
  %457 = vmatpush2.msra.mxu0 0.0
  %458 = vmatprep.subr.mxu0 0.0
  %459 = vmatpush2.msra.mxu0 0.0
  %460 = vmatprep.subr.mxu0 0.0
  %461 = vmatpush2.msra.mxu0 0.0
  %462 = vmatprep.subr.mxu0 0.0
  %463 = vmatpush2.msra.mxu0 0.0
  %464 = vmatprep.subr.mxu0 0.0
  %465 = vmatpush2.msra.mxu0 0.0
  %466 = vmatprep.subr.mxu0 0.0
  %467 = vmatpush2.msra.mxu0 0.0
  %468 = vmatprep.subr.mxu0 0.0
  %469 = vmatpush2.msra.mxu0 0.0
  %470 = vmatprep.subr.mxu0 0.0
  %471 = vmatpush2.msra.mxu0 0.0
  %472 = vmatprep.subr.mxu0 0.0
  %473 = vmatpush2.msra.mxu0 0.0
  %474 = vmatprep.subr.mxu0 0.0
  %475 = vmatpush2.msra.mxu0 0.0
  %476 = vmatprep.subr.mxu0 0.0
  %477 = vmatpush2.msra.mxu0 0.0
  %478 = vmatprep.subr.mxu0 0.0
  %479 = vmatpush2.msra.mxu0 0.0
  %480 = vmatprep.subr.mxu0 0.0
  %481 = vmatpush2.msra.mxu0 0.0
  %482 = vmatprep.subr.mxu0 0.0
  %483 = vmatpush2.msra.mxu0 0.0
  %484 = vmatprep.subr.mxu0 0.0
  %485 = vmatpush2.msra.mxu0 0.0
  %486 = vmatprep.subr.mxu0 0.0
  %487 = vmatpush2.msra.mxu0 0.0
  %488 = vmatprep.mubr.f32.mxu0 0.0
  %489 = vmatmul.mubr.f32.gmra.mxu0 %v419
  %v490 = vpop.f32.mrf.mxu0
  %v491 = vadd.f32 %v411, %v490
  %v492 = vpop.f32.mrf.mxu0
  %v493 = vadd.f32 %v411, %v492
  %494 = vmatprep.mubr.f32.mxu0 0.0
  %495 = vmatmul.mubr.f32.gmra.mxu0 %v422
  %v496 = vpop.f32.mrf.mxu0
  %v497 = vadd.f32 %v416, %v496
  %v498 = vpop.f32.mrf.mxu0
  %v499 = vadd.f32 %v416, %v498
  %500 = vdwg.mxu0
  %501 = vmatprep.subr.mxu0 0.0
  %502 = vmatpush1.msra.mxu0 0.0
  %503 = vmatprep.subr.mxu0 0.0
  %504 = vmatpush1.msra.mxu0 0.0
  %505 = vmatprep.subr.mxu0 0.0
  %506 = vmatpush1.msra.mxu0 0.0
  %507 = vmatprep.subr.mxu0 0.0
  %508 = vmatpush1.msra.mxu0 0.0
  %509 = vmatprep.subr.mxu0 0.0
  %510 = vmatpush1.msra.mxu0 0.0
  %511 = vmatprep.subr.mxu0 0.0
  %512 = vmatpush1.msra.mxu0 0.0
  %513 = vmatprep.subr.mxu0 0.0
  %514 = vmatpush1.msra.mxu0 0.0
  %515 = vmatprep.subr.mxu0 0.0
  %516 = vmatpush1.msra.mxu0 0.0
  %517 = vmatprep.subr.mxu0 0.0
  %518 = vmatpush1.msra.mxu0 0.0
  %519 = vmatprep.subr.mxu0 0.0
  %520 = vmatpush1.msra.mxu0 0.0
  %521 = vmatprep.subr.mxu0 0.0
  %522 = vmatpush1.msra.mxu0 0.0
  %523 = vmatprep.subr.mxu0 0.0
  %524 = vmatpush1.msra.mxu0 0.0
  %525 = vmatprep.subr.mxu0 0.0
  %526 = vmatpush1.msra.mxu0 0.0
  %527 = vmatprep.subr.mxu0 0.0
  %528 = vmatpush1.msra.mxu0 0.0
  %529 = vmatprep.subr.mxu0 %v407
  %530 = vmatpush1.msra.mxu0 %v406
  %531 = vmatprep.subr.mxu0 %v403
  %532 = vmatpush1.msra.mxu0 %v402
  %533 = vmatprep.subr.mxu0 0.0
  %534 = vmatpush2.msra.mxu0 0.0
  %535 = vmatprep.subr.mxu0 0.0
  %536 = vmatpush2.msra.mxu0 0.0
  %537 = vmatprep.subr.mxu0 0.0
  %538 = vmatpush2.msra.mxu0 0.0
  %539 = vmatprep.subr.mxu0 0.0
  %540 = vmatpush2.msra.mxu0 0.0
  %541 = vmatprep.subr.mxu0 0.0
  %542 = vmatpush2.msra.mxu0 0.0
  %543 = vmatprep.subr.mxu0 0.0
  %544 = vmatpush2.msra.mxu0 0.0
  %545 = vmatprep.subr.mxu0 0.0
  %546 = vmatpush2.msra.mxu0 0.0
  %547 = vmatprep.subr.mxu0 0.0
  %548 = vmatpush2.msra.mxu0 0.0
  %549 = vmatprep.subr.mxu0 0.0
  %550 = vmatpush2.msra.mxu0 0.0
  %551 = vmatprep.subr.mxu0 0.0
  %552 = vmatpush2.msra.mxu0 0.0
  %553 = vmatprep.subr.mxu0 0.0
  %554 = vmatpush2.msra.mxu0 0.0
  %555 = vmatprep.subr.mxu0 0.0
  %556 = vmatpush2.msra.mxu0 0.0
  %557 = vmatprep.subr.mxu0 0.0
  %558 = vmatpush2.msra.mxu0 0.0
  %559 = vmatprep.subr.mxu0 0.0
  %560 = vmatpush2.msra.mxu0 0.0
  %561 = vmatprep.subr.mxu0 0.0
  %562 = vmatpush2.msra.mxu0 0.0
  %563 = vmatprep.subr.mxu0 0.0
  %564 = vmatpush2.msra.mxu0 0.0
  %565 = vmatprep.mubr.f32.mxu0 0.0
  %566 = vmatmul.mubr.f32.gmra.mxu0 %v419
  %v567 = vpop.f32.mrf.mxu0
  %v568 = vadd.f32 %v411, %v567
  %v569 = vpop.f32.mrf.mxu0
  %v570 = vadd.f32 %v411, %v569
  %571 = vmatprep.mubr.f32.mxu0 0.0
  %572 = vmatmul.mubr.f32.gmra.mxu0 %v422
  %v573 = vpop.f32.mrf.mxu0
  %v574 = vadd.f32 %v416, %v573
  %v575 = vpop.f32.mrf.mxu0
  %v576 = vadd.f32 %v416, %v575
  %577 = vdwg.mxu0
  %v578 = vmax.f32 %v491, 0.0
  %v579 = vmax.f32 %v493, 0.0
  %v580 = vmax.f32 %v568, 0.0
  %v581 = vmax.f32 %v570, 0.0
  %v582 = vmax.f32 %v497, 0.0
  %v583 = vmax.f32 %v499, 0.0
  %v584 = vmax.f32 %v574, 0.0
  %v585 = vmax.f32 %v576, 0.0
  %v587 = vsel %vm239, %v42, 0
  %589 = vmatprep.subr.mxu0 0.0
  %590 = vmatpush1.msra.mxu0 0.0
  %591 = vmatprep.subr.mxu0 0.0
  %592 = vmatpush1.msra.mxu0 0.0
  %593 = vmatprep.subr.mxu0 0.0
  %594 = vmatpush1.msra.mxu0 0.0
  %595 = vmatprep.subr.mxu0 0.0
  %596 = vmatpush1.msra.mxu0 0.0
  %597 = vmatprep.subr.mxu0 0.0
  %598 = vmatpush1.msra.mxu0 0.0
  %599 = vmatprep.subr.mxu0 0.0
  %600 = vmatpush1.msra.mxu0 0.0
  %601 = vmatprep.subr.mxu0 0.0
  %602 = vmatpush1.msra.mxu0 0.0
  %603 = vmatprep.subr.mxu0 0.0
  %604 = vmatpush1.msra.mxu0 0.0
  %605 = vmatprep.subr.mxu0 0.0
  %606 = vmatpush1.msra.mxu0 0.0
  %607 = vmatprep.subr.mxu0 0.0
  %608 = vmatpush1.msra.mxu0 0.0
  %609 = vmatprep.subr.mxu0 0.0
  %610 = vmatpush1.msra.mxu0 0.0
  %611 = vmatprep.subr.mxu0 0.0
  %612 = vmatpush1.msra.mxu0 0.0
  %613 = vmatprep.subr.mxu0 0.0
  %614 = vmatpush1.msra.mxu0 0.0
  %615 = vmatprep.subr.mxu0 0.0
  %616 = vmatpush1.msra.mxu0 0.0
  %617 = vmatprep.subr.mxu0 %v226
  %618 = vmatpush1.msra.mxu0 %v225
  %619 = vmatprep.subr.mxu0 %v222
  %620 = vmatpush1.msra.mxu0 %v221
  %621 = vmatprep.subr.mxu0 0.0
  %622 = vmatpush2.msra.mxu0 0.0
  %623 = vmatprep.subr.mxu0 0.0
  %624 = vmatpush2.msra.mxu0 0.0
  %625 = vmatprep.subr.mxu0 0.0
  %626 = vmatpush2.msra.mxu0 0.0
  %627 = vmatprep.subr.mxu0 0.0
  %628 = vmatpush2.msra.mxu0 0.0
  %629 = vmatprep.subr.mxu0 0.0
  %630 = vmatpush2.msra.mxu0 0.0
  %631 = vmatprep.subr.mxu0 0.0
  %632 = vmatpush2.msra.mxu0 0.0
  %633 = vmatprep.subr.mxu0 0.0
  %634 = vmatpush2.msra.mxu0 0.0
  %635 = vmatprep.subr.mxu0 0.0
  %636 = vmatpush2.msra.mxu0 0.0
  %637 = vmatprep.subr.mxu0 0.0
  %638 = vmatpush2.msra.mxu0 0.0
  %639 = vmatprep.subr.mxu0 0.0
  %640 = vmatpush2.msra.mxu0 0.0
  %641 = vmatprep.subr.mxu0 0.0
  %642 = vmatpush2.msra.mxu0 0.0
  %643 = vmatprep.subr.mxu0 0.0
  %644 = vmatpush2.msra.mxu0 0.0
  %645 = vmatprep.subr.mxu0 0.0
  %646 = vmatpush2.msra.mxu0 0.0
  %647 = vmatprep.subr.mxu0 0.0
  %648 = vmatpush2.msra.mxu0 0.0
  %649 = vmatprep.subr.mxu0 0.0
  %650 = vmatpush2.msra.mxu0 0.0
  %651 = vmatprep.subr.mxu0 0.0
  %652 = vmatpush2.msra.mxu0 0.0
  %653 = vmatprep.mubr.f32.mxu0 0.0
  %654 = vmatmul.mubr.f32.gmra.mxu0 %v587
  %v655 = vpop.f32.mrf.mxu0
  %v656 = vadd.f32 0.0, %v655
  %v657 = vpop.f32.mrf.mxu0
  %v658 = vadd.f32 0.0, %v657
  %659 = vdwg.mxu0
  %660 = vmatprep.subr.mxu0 0.0
  %661 = vmatpush1.msra.mxu0 0.0
  %662 = vmatprep.subr.mxu0 0.0
  %663 = vmatpush1.msra.mxu0 0.0
  %664 = vmatprep.subr.mxu0 0.0
  %665 = vmatpush1.msra.mxu0 0.0
  %666 = vmatprep.subr.mxu0 0.0
  %667 = vmatpush1.msra.mxu0 0.0
  %668 = vmatprep.subr.mxu0 0.0
  %669 = vmatpush1.msra.mxu0 0.0
  %670 = vmatprep.subr.mxu0 0.0
  %671 = vmatpush1.msra.mxu0 0.0
  %672 = vmatprep.subr.mxu0 0.0
  %673 = vmatpush1.msra.mxu0 0.0
  %674 = vmatprep.subr.mxu0 0.0
  %675 = vmatpush1.msra.mxu0 0.0
  %676 = vmatprep.subr.mxu0 0.0
  %677 = vmatpush1.msra.mxu0 0.0
  %678 = vmatprep.subr.mxu0 0.0
  %679 = vmatpush1.msra.mxu0 0.0
  %680 = vmatprep.subr.mxu0 0.0
  %681 = vmatpush1.msra.mxu0 0.0
  %682 = vmatprep.subr.mxu0 0.0
  %683 = vmatpush1.msra.mxu0 0.0
  %684 = vmatprep.subr.mxu0 0.0
  %685 = vmatpush1.msra.mxu0 0.0
  %686 = vmatprep.subr.mxu0 0.0
  %687 = vmatpush1.msra.mxu0 0.0
  %688 = vmatprep.subr.mxu0 %v228
  %689 = vmatpush1.msra.mxu0 %v227
  %690 = vmatprep.subr.mxu0 %v224
  %691 = vmatpush1.msra.mxu0 %v223
  %692 = vmatprep.subr.mxu0 0.0
  %693 = vmatpush2.msra.mxu0 0.0
  %694 = vmatprep.subr.mxu0 0.0
  %695 = vmatpush2.msra.mxu0 0.0
  %696 = vmatprep.subr.mxu0 0.0
  %697 = vmatpush2.msra.mxu0 0.0
  %698 = vmatprep.subr.mxu0 0.0
  %699 = vmatpush2.msra.mxu0 0.0
  %700 = vmatprep.subr.mxu0 0.0
  %701 = vmatpush2.msra.mxu0 0.0
  %702 = vmatprep.subr.mxu0 0.0
  %703 = vmatpush2.msra.mxu0 0.0
  %704 = vmatprep.subr.mxu0 0.0
  %705 = vmatpush2.msra.mxu0 0.0
  %706 = vmatprep.subr.mxu0 0.0
  %707 = vmatpush2.msra.mxu0 0.0
  %708 = vmatprep.subr.mxu0 0.0
  %709 = vmatpush2.msra.mxu0 0.0
  %710 = vmatprep.subr.mxu0 0.0
  %711 = vmatpush2.msra.mxu0 0.0
  %712 = vmatprep.subr.mxu0 0.0
  %713 = vmatpush2.msra.mxu0 0.0
  %714 = vmatprep.subr.mxu0 0.0
  %715 = vmatpush2.msra.mxu0 0.0
  %716 = vmatprep.subr.mxu0 0.0
  %717 = vmatpush2.msra.mxu0 0.0
  %718 = vmatprep.subr.mxu0 0.0
  %719 = vmatpush2.msra.mxu0 0.0
  %720 = vmatprep.subr.mxu0 0.0
  %721 = vmatpush2.msra.mxu0 0.0
  %722 = vmatprep.subr.mxu0 0.0
  %723 = vmatpush2.msra.mxu0 0.0
  %724 = vmatprep.mubr.f32.mxu0 0.0
  %725 = vmatmul.mubr.f32.gmra.mxu0 %v587
  %v726 = vpop.f32.mrf.mxu0
  %v727 = vadd.f32 0.0, %v726
  %v728 = vpop.f32.mrf.mxu0
  %v729 = vadd.f32 0.0, %v728
  %730 = vdwg.mxu0
  %v732 = vsel %vm60, %v41, 0
  %734 = vmatprep.subr.mxu0 0.0
  %735 = vmatpush1.msra.mxu0 0.0
  %736 = vmatprep.subr.mxu0 0.0
  %737 = vmatpush1.msra.mxu0 0.0
  %738 = vmatprep.subr.mxu0 0.0
  %739 = vmatpush1.msra.mxu0 0.0
  %740 = vmatprep.subr.mxu0 0.0
  %741 = vmatpush1.msra.mxu0 0.0
  %742 = vmatprep.subr.mxu0 0.0
  %743 = vmatpush1.msra.mxu0 0.0
  %744 = vmatprep.subr.mxu0 0.0
  %745 = vmatpush1.msra.mxu0 0.0
  %746 = vmatprep.subr.mxu0 0.0
  %747 = vmatpush1.msra.mxu0 0.0
  %748 = vmatprep.subr.mxu0 0.0
  %749 = vmatpush1.msra.mxu0 0.0
  %750 = vmatprep.subr.mxu0 0.0
  %751 = vmatpush1.msra.mxu0 0.0
  %752 = vmatprep.subr.mxu0 0.0
  %753 = vmatpush1.msra.mxu0 0.0
  %754 = vmatprep.subr.mxu0 0.0
  %755 = vmatpush1.msra.mxu0 0.0
  %756 = vmatprep.subr.mxu0 0.0
  %757 = vmatpush1.msra.mxu0 0.0
  %758 = vmatprep.subr.mxu0 0.0
  %759 = vmatpush1.msra.mxu0 0.0
  %760 = vmatprep.subr.mxu0 0.0
  %761 = vmatpush1.msra.mxu0 0.0
  %762 = vmatprep.subr.mxu0 0.0
  %763 = vmatpush1.msra.mxu0 0.0
  %764 = vmatprep.subr.mxu0 %v47
  %765 = vmatpush1.msra.mxu0 %v46
  %766 = vmatprep.subr.mxu0 0.0
  %767 = vmatpush2.msra.mxu0 0.0
  %768 = vmatprep.subr.mxu0 0.0
  %769 = vmatpush2.msra.mxu0 0.0
  %770 = vmatprep.subr.mxu0 0.0
  %771 = vmatpush2.msra.mxu0 0.0
  %772 = vmatprep.subr.mxu0 0.0
  %773 = vmatpush2.msra.mxu0 0.0
  %774 = vmatprep.subr.mxu0 0.0
  %775 = vmatpush2.msra.mxu0 0.0
  %776 = vmatprep.subr.mxu0 0.0
  %777 = vmatpush2.msra.mxu0 0.0
  %778 = vmatprep.subr.mxu0 0.0
  %779 = vmatpush2.msra.mxu0 0.0
  %780 = vmatprep.subr.mxu0 0.0
  %781 = vmatpush2.msra.mxu0 0.0
  %782 = vmatprep.subr.mxu0 0.0
  %783 = vmatpush2.msra.mxu0 0.0
  %784 = vmatprep.subr.mxu0 0.0
  %785 = vmatpush2.msra.mxu0 0.0
  %786 = vmatprep.subr.mxu0 0.0
  %787 = vmatpush2.msra.mxu0 0.0
  %788 = vmatprep.subr.mxu0 0.0
  %789 = vmatpush2.msra.mxu0 0.0
  %790 = vmatprep.subr.mxu0 0.0
  %791 = vmatpush2.msra.mxu0 0.0
  %792 = vmatprep.subr.mxu0 0.0
  %793 = vmatpush2.msra.mxu0 0.0
  %794 = vmatprep.subr.mxu0 0.0
  %795 = vmatpush2.msra.mxu0 0.0
  %796 = vmatprep.subr.mxu0 0.0
  %797 = vmatpush2.msra.mxu0 0.0
  %798 = vmatprep.mubr.f32.mxu0 0.0
  %799 = vmatmul.mubr.f32.gmra.mxu0 %v732
  %v800 = vpop.f32.mrf.mxu0
  %v801 = vadd.f32 %v656, %v800
  %v802 = vpop.f32.mrf.mxu0
  %v803 = vadd.f32 %v658, %v802
  %804 = vdwg.mxu0
  %805 = vmatprep.subr.mxu0 0.0
  %806 = vmatpush1.msra.mxu0 0.0
  %807 = vmatprep.subr.mxu0 0.0
  %808 = vmatpush1.msra.mxu0 0.0
  %809 = vmatprep.subr.mxu0 0.0
  %810 = vmatpush1.msra.mxu0 0.0
  %811 = vmatprep.subr.mxu0 0.0
  %812 = vmatpush1.msra.mxu0 0.0
  %813 = vmatprep.subr.mxu0 0.0
  %814 = vmatpush1.msra.mxu0 0.0
  %815 = vmatprep.subr.mxu0 0.0
  %816 = vmatpush1.msra.mxu0 0.0
  %817 = vmatprep.subr.mxu0 0.0
  %818 = vmatpush1.msra.mxu0 0.0
  %819 = vmatprep.subr.mxu0 0.0
  %820 = vmatpush1.msra.mxu0 0.0
  %821 = vmatprep.subr.mxu0 0.0
  %822 = vmatpush1.msra.mxu0 0.0
  %823 = vmatprep.subr.mxu0 0.0
  %824 = vmatpush1.msra.mxu0 0.0
  %825 = vmatprep.subr.mxu0 0.0
  %826 = vmatpush1.msra.mxu0 0.0
  %827 = vmatprep.subr.mxu0 0.0
  %828 = vmatpush1.msra.mxu0 0.0
  %829 = vmatprep.subr.mxu0 0.0
  %830 = vmatpush1.msra.mxu0 0.0
  %831 = vmatprep.subr.mxu0 0.0
  %832 = vmatpush1.msra.mxu0 0.0
  %833 = vmatprep.subr.mxu0 0.0
  %834 = vmatpush1.msra.mxu0 0.0
  %835 = vmatprep.subr.mxu0 %v49
  %836 = vmatpush1.msra.mxu0 %v48
  %837 = vmatprep.subr.mxu0 0.0
  %838 = vmatpush2.msra.mxu0 0.0
  %839 = vmatprep.subr.mxu0 0.0
  %840 = vmatpush2.msra.mxu0 0.0
  %841 = vmatprep.subr.mxu0 0.0
  %842 = vmatpush2.msra.mxu0 0.0
  %843 = vmatprep.subr.mxu0 0.0
  %844 = vmatpush2.msra.mxu0 0.0
  %845 = vmatprep.subr.mxu0 0.0
  %846 = vmatpush2.msra.mxu0 0.0
  %847 = vmatprep.subr.mxu0 0.0
  %848 = vmatpush2.msra.mxu0 0.0
  %849 = vmatprep.subr.mxu0 0.0
  %850 = vmatpush2.msra.mxu0 0.0
  %851 = vmatprep.subr.mxu0 0.0
  %852 = vmatpush2.msra.mxu0 0.0
  %853 = vmatprep.subr.mxu0 0.0
  %854 = vmatpush2.msra.mxu0 0.0
  %855 = vmatprep.subr.mxu0 0.0
  %856 = vmatpush2.msra.mxu0 0.0
  %857 = vmatprep.subr.mxu0 0.0
  %858 = vmatpush2.msra.mxu0 0.0
  %859 = vmatprep.subr.mxu0 0.0
  %860 = vmatpush2.msra.mxu0 0.0
  %861 = vmatprep.subr.mxu0 0.0
  %862 = vmatpush2.msra.mxu0 0.0
  %863 = vmatprep.subr.mxu0 0.0
  %864 = vmatpush2.msra.mxu0 0.0
  %865 = vmatprep.subr.mxu0 0.0
  %866 = vmatpush2.msra.mxu0 0.0
  %867 = vmatprep.subr.mxu0 0.0
  %868 = vmatpush2.msra.mxu0 0.0
  %869 = vmatprep.mubr.f32.mxu0 0.0
  %870 = vmatmul.mubr.f32.gmra.mxu0 %v732
  %v871 = vpop.f32.mrf.mxu0
  %v872 = vadd.f32 %v727, %v871
  %v873 = vpop.f32.mrf.mxu0
  %v874 = vadd.f32 %v729, %v873
  %875 = vdwg.mxu0
  %v877 = vsel %vm239, %v44, 0
  %879 = vmatprep.subr.mxu0 0.0
  %880 = vmatpush1.msra.mxu0 0.0
  %881 = vmatprep.subr.mxu0 0.0
  %882 = vmatpush1.msra.mxu0 0.0
  %883 = vmatprep.subr.mxu0 0.0
  %884 = vmatpush1.msra.mxu0 0.0
  %885 = vmatprep.subr.mxu0 0.0
  %886 = vmatpush1.msra.mxu0 0.0
  %887 = vmatprep.subr.mxu0 0.0
  %888 = vmatpush1.msra.mxu0 0.0
  %889 = vmatprep.subr.mxu0 0.0
  %890 = vmatpush1.msra.mxu0 0.0
  %891 = vmatprep.subr.mxu0 0.0
  %892 = vmatpush1.msra.mxu0 0.0
  %893 = vmatprep.subr.mxu0 0.0
  %894 = vmatpush1.msra.mxu0 0.0
  %895 = vmatprep.subr.mxu0 0.0
  %896 = vmatpush1.msra.mxu0 0.0
  %897 = vmatprep.subr.mxu0 0.0
  %898 = vmatpush1.msra.mxu0 0.0
  %899 = vmatprep.subr.mxu0 0.0
  %900 = vmatpush1.msra.mxu0 0.0
  %901 = vmatprep.subr.mxu0 0.0
  %902 = vmatpush1.msra.mxu0 0.0
  %903 = vmatprep.subr.mxu0 0.0
  %904 = vmatpush1.msra.mxu0 0.0
  %905 = vmatprep.subr.mxu0 0.0
  %906 = vmatpush1.msra.mxu0 0.0
  %907 = vmatprep.subr.mxu0 %v583
  %908 = vmatpush1.msra.mxu0 %v582
  %909 = vmatprep.subr.mxu0 %v579
  %910 = vmatpush1.msra.mxu0 %v578
  %911 = vmatprep.subr.mxu0 0.0
  %912 = vmatpush2.msra.mxu0 0.0
  %913 = vmatprep.subr.mxu0 0.0
  %914 = vmatpush2.msra.mxu0 0.0
  %915 = vmatprep.subr.mxu0 0.0
  %916 = vmatpush2.msra.mxu0 0.0
  %917 = vmatprep.subr.mxu0 0.0
  %918 = vmatpush2.msra.mxu0 0.0
  %919 = vmatprep.subr.mxu0 0.0
  %920 = vmatpush2.msra.mxu0 0.0
  %921 = vmatprep.subr.mxu0 0.0
  %922 = vmatpush2.msra.mxu0 0.0
  %923 = vmatprep.subr.mxu0 0.0
  %924 = vmatpush2.msra.mxu0 0.0
  %925 = vmatprep.subr.mxu0 0.0
  %926 = vmatpush2.msra.mxu0 0.0
  %927 = vmatprep.subr.mxu0 0.0
  %928 = vmatpush2.msra.mxu0 0.0
  %929 = vmatprep.subr.mxu0 0.0
  %930 = vmatpush2.msra.mxu0 0.0
  %931 = vmatprep.subr.mxu0 0.0
  %932 = vmatpush2.msra.mxu0 0.0
  %933 = vmatprep.subr.mxu0 0.0
  %934 = vmatpush2.msra.mxu0 0.0
  %935 = vmatprep.subr.mxu0 0.0
  %936 = vmatpush2.msra.mxu0 0.0
  %937 = vmatprep.subr.mxu0 0.0
  %938 = vmatpush2.msra.mxu0 0.0
  %939 = vmatprep.subr.mxu0 0.0
  %940 = vmatpush2.msra.mxu0 0.0
  %941 = vmatprep.subr.mxu0 0.0
  %942 = vmatpush2.msra.mxu0 0.0
  %943 = vmatprep.mubr.f32.mxu0 0.0
  %944 = vmatmul.mubr.f32.gmra.mxu0 %v877
  %v945 = vpop.f32.mrf.mxu0
  %v946 = vadd.f32 0.0, %v945
  %v947 = vpop.f32.mrf.mxu0
  %v948 = vadd.f32 0.0, %v947
  %949 = vdwg.mxu0
  %950 = vmatprep.subr.mxu0 0.0
  %951 = vmatpush1.msra.mxu0 0.0
  %952 = vmatprep.subr.mxu0 0.0
  %953 = vmatpush1.msra.mxu0 0.0
  %954 = vmatprep.subr.mxu0 0.0
  %955 = vmatpush1.msra.mxu0 0.0
  %956 = vmatprep.subr.mxu0 0.0
  %957 = vmatpush1.msra.mxu0 0.0
  %958 = vmatprep.subr.mxu0 0.0
  %959 = vmatpush1.msra.mxu0 0.0
  %960 = vmatprep.subr.mxu0 0.0
  %961 = vmatpush1.msra.mxu0 0.0
  %962 = vmatprep.subr.mxu0 0.0
  %963 = vmatpush1.msra.mxu0 0.0
  %964 = vmatprep.subr.mxu0 0.0
  %965 = vmatpush1.msra.mxu0 0.0
  %966 = vmatprep.subr.mxu0 0.0
  %967 = vmatpush1.msra.mxu0 0.0
  %968 = vmatprep.subr.mxu0 0.0
  %969 = vmatpush1.msra.mxu0 0.0
  %970 = vmatprep.subr.mxu0 0.0
  %971 = vmatpush1.msra.mxu0 0.0
  %972 = vmatprep.subr.mxu0 0.0
  %973 = vmatpush1.msra.mxu0 0.0
  %974 = vmatprep.subr.mxu0 0.0
  %975 = vmatpush1.msra.mxu0 0.0
  %976 = vmatprep.subr.mxu0 0.0
  %977 = vmatpush1.msra.mxu0 0.0
  %978 = vmatprep.subr.mxu0 %v585
  %979 = vmatpush1.msra.mxu0 %v584
  %980 = vmatprep.subr.mxu0 %v581
  %981 = vmatpush1.msra.mxu0 %v580
  %982 = vmatprep.subr.mxu0 0.0
  %983 = vmatpush2.msra.mxu0 0.0
  %984 = vmatprep.subr.mxu0 0.0
  %985 = vmatpush2.msra.mxu0 0.0
  %986 = vmatprep.subr.mxu0 0.0
  %987 = vmatpush2.msra.mxu0 0.0
  %988 = vmatprep.subr.mxu0 0.0
  %989 = vmatpush2.msra.mxu0 0.0
  %990 = vmatprep.subr.mxu0 0.0
  %991 = vmatpush2.msra.mxu0 0.0
  %992 = vmatprep.subr.mxu0 0.0
  %993 = vmatpush2.msra.mxu0 0.0
  %994 = vmatprep.subr.mxu0 0.0
  %995 = vmatpush2.msra.mxu0 0.0
  %996 = vmatprep.subr.mxu0 0.0
  %997 = vmatpush2.msra.mxu0 0.0
  %998 = vmatprep.subr.mxu0 0.0
  %999 = vmatpush2.msra.mxu0 0.0
  %1000 = vmatprep.subr.mxu0 0.0
  %1001 = vmatpush2.msra.mxu0 0.0
  %1002 = vmatprep.subr.mxu0 0.0
  %1003 = vmatpush2.msra.mxu0 0.0
  %1004 = vmatprep.subr.mxu0 0.0
  %1005 = vmatpush2.msra.mxu0 0.0
  %1006 = vmatprep.subr.mxu0 0.0
  %1007 = vmatpush2.msra.mxu0 0.0
  %1008 = vmatprep.subr.mxu0 0.0
  %1009 = vmatpush2.msra.mxu0 0.0
  %1010 = vmatprep.subr.mxu0 0.0
  %1011 = vmatpush2.msra.mxu0 0.0
  %1012 = vmatprep.subr.mxu0 0.0
  %1013 = vmatpush2.msra.mxu0 0.0
  %1014 = vmatprep.mubr.f32.mxu0 0.0
  %1015 = vmatmul.mubr.f32.gmra.mxu0 %v877
  %v1016 = vpop.f32.mrf.mxu0
  %v1017 = vadd.f32 0.0, %v1016
  %v1018 = vpop.f32.mrf.mxu0
  %v1019 = vadd.f32 0.0, %v1018
  %1020 = vdwg.mxu0
  %v1021 = vadd.f32 %v801, %v946
  %v1022 = vadd.f32 %v803, %v948
  %v1023 = vadd.f32 %v872, %v1017
  %v1024 = vadd.f32 %v874, %v1019
  %1026 = vset.pattern.permute.xlu0 0
  %1027 = vperm.xlu0 %1026, %v45
  %v1028 = vpop.permute.xlu0 %1027
  %v1030 = vadd.f32 %v1021, %v1028
  %v1031 = vadd.f32 %v1022, %v1028
  %v1032 = vadd.f32 %v1023, %v1028
  %v1033 = vadd.f32 %v1024, %v1028
  %1034 = vst [vmem:[%s7] sm:$0xff] %v1030
  %1035 = vst [vmem:[%s7 + $0x8] sm:$0xff] %v1031
  %1036 = vst [vmem:[%s7 + $0x10] sm:$0xff] %v1032
  %1037 = vst [vmem:[%s7 + $0x18] sm:$0xff] %v1033
  // Predicated region
  $region30: #{net_forward.1} parent=0 // pred_check
    _
  $region31: #{net_forward.1} parent=0 // pred_check_branch
    %1039 = sbr.rel (0) target = $region33
  $region32: #{net_forward.1} parent=0 // pred_region
    _
  $region33: #{net_forward.1} parent=0 // pred_fallthru
    _
  // Predicated region
  $region34: #{net_forward.1} parent=0 // pred_check
    _
  $region35: #{net_forward.1} parent=0 // pred_check_branch
    %1041 = sbr.rel (0) target = $region37
  $region36: #{net_forward.1} parent=0 // pred_region
    _
  $region37: #{net_forward.1} parent=0 // pred_fallthru
    _

</llo_original>
